<compile_context>
chip_gen: v7x
topology: tpu7x:2x2x1
jax: 0.10.0
libtpu: 0.0.40
codegen_flags: <defaults>
</compile_context>

<pallas_src>
import functools

import jax
import jax.numpy as jnp
from jax import lax
from jax.experimental import pallas as pl
from jax.experimental.pallas import tpu as pltpu

_LANE = 128
_GROUP = 32          # rows per in-kernel accumulation group (int8-pack friendly)


def _dice_stats_kernel(x_ref, t_ref, acc_ref, *, rows_valid, tiles_per_part,
                       tile_rows):
    """Accumulate (inter, sum_x, sum_t) per-(row%GROUP, lane) f32 partials.

    x_ref / t_ref: (1, tile_rows, 128) blocks in their native dtype.
    acc_ref:       (1, 1, 3, 32, 128) f32, resident across grid axis 2.
    """
    p = pl.program_id(1)
    r = pl.program_id(2)

    @pl.when(r == 0)
    def _():
        acc_ref[...] = jnp.zeros_like(acc_ref)

    # Number of rows of this tile holding real data (<= 0 for the redundant,
    # clamped tiles produced when the megacore split does not divide evenly).
    row_start = (p * tiles_per_part + r) * tile_rows
    valid = rows_valid - row_start                       # traced int32 scalar

    sub_iota = lax.broadcasted_iota(jnp.int32, (_GROUP, _LANE), 0)
    n_groups = tile_rows // _GROUP

    def body(g, carry):
        inter, xs, ts = carry
        off = pl.multiple_of(g * _GROUP, _GROUP)
        live = sub_iota < (valid - off)                  # prefix-row mask
        xg = x_ref[0, pl.ds(off, _GROUP), :].astype(jnp.float32)
        tg = t_ref[0, pl.ds(off, _GROUP), :].astype(jnp.float32)
        xg = jnp.where(live, xg, 0.0)                    # garbage rows -> 0
        tg = jnp.where(live, tg, 0.0)
        return (inter + xg * tg, xs + xg, ts + tg)

    zero = jnp.zeros((_GROUP, _LANE), jnp.float32)
    inter, xs, ts = lax.fori_loop(0, n_groups, body, (zero, zero, zero),
                                  unroll=min(8, n_groups))

    acc_ref[0, 0, 0] += inter
    acc_ref[0, 0, 1] += xs
    acc_ref[0, 0, 2] += ts


@functools.partial(jax.jit, static_argnames=("max_tile_rows",))
def binary_dice(inputs, targets, *, max_tile_rows=4096):
    """Pallas implementation of BinaryDice.forward (returns the coefficient)."""
    N = targets.shape[0]
    smooth = 1.0

    # Native dtype on the wire; the f32 upcast happens inside the kernel.
    x = inputs.reshape(N, -1)            # contiguous reshape: no HBM copy
    t = targets.reshape(N, -1)
    S = x.shape[1]

    # Lane-dense layout (N, R, 128).  Pad only when the flattened size is not
    # already a 128-multiple (ragged shapes) or the sample is tiny; zero
    # padding is exact for all three Dice sums.
    R = max(pl.cdiv(S, _LANE), _GROUP)
    S_pad = R * _LANE
    if S_pad != S:
        # TODO(synk): ragged flattened sizes still cost one minimal pad copy
        # (to the next 128 multiple); all tile raggedness is masked in-kernel.
        x = jnp.pad(x, ((0, 0), (0, S_pad - S)))
        t = jnp.pad(t, ((0, 0), (0, S_pad - S)))
    x = x.reshape(N, R, _LANE)
    t = t.reshape(N, R, _LANE)

    # Megacore split of the spatial reduction: only for tiny odd batches
    # (for N>=2 even, the "parallel" N axis already feeds both v7x cores).
    P = 2 if (N < 4 and N % 2 == 1 and R >= 2 * _GROUP) else 1

    TR = min(max(_GROUP, (max_tile_rows // _GROUP) * _GROUP),
             max(_GROUP, (pl.cdiv(R, P) // _GROUP) * _GROUP))
    n_blocks = pl.cdiv(R, TR)
    tiles_per_part = pl.cdiv(n_blocks, P)

    def in_map(n, p, r):
        # Clamp redundant steps (odd n_blocks with P=2) onto the last real
        # block; the kernel masks their contribution to exactly zero.
        return (n, jnp.minimum(p * tiles_per_part + r, n_blocks - 1), 0)

    out_map = lambda n, p, r: (n, p, 0, 0, 0)            # resident across r

    kernel = functools.partial(
        _dice_stats_kernel, rows_valid=R, tiles_per_part=tiles_per_part,
        tile_rows=TR)

    grid_spec = pltpu.PrefetchScalarGridSpec(
        num_scalar_prefetch=0,
        grid=(N, P, tiles_per_part),
        in_specs=[
            pl.BlockSpec((1, TR, _LANE), in_map),
            pl.BlockSpec((1, TR, _LANE), in_map),
        ],
        out_specs=pl.BlockSpec((1, 1, 3, _GROUP, _LANE), out_map),
    )

    out_bytes = N * P * 3 * _GROUP * _LANE * 4
    cost = pl.CostEstimate(
        flops=3 * N * S_pad,
        transcendentals=0,
        bytes_accessed=N * S_pad * (x.dtype.itemsize + t.dtype.itemsize)
        + out_bytes)

    acc = pl.pallas_call(
        kernel,
        out_shape=jax.ShapeDtypeStruct((N, P, 3, _GROUP, _LANE), jnp.float32),
        grid_spec=grid_spec,
        compiler_params=pltpu.CompilerParams(
            dimension_semantics=("parallel", "parallel", "arbitrary")),
        cost_estimate=cost,
    )(x, t)

    # Tiny scalar epilogue, matching the PyTorch forward exactly.
    stats = jnp.sum(acc, axis=(1, 3, 4))                 # (N, 3)
    inter, xsum, tsum = stats[:, 0], stats[:, 1], stats[:, 2]
    dice_eff = (2.0 * inter + smooth) / (xsum + tsum + smooth)
    return jnp.sum(dice_eff) / N


def _reference_dice(inputs, targets):
    """Pure-JAX mirror of the PyTorch BinaryDice module (f32 accumulation)."""
    N = targets.shape[0]
    smooth = 1.0
    xf = inputs.reshape(N, -1).astype(jnp.float32)
    tf = targets.reshape(N, -1).astype(jnp.float32)
    inter = jnp.sum(xf * tf, axis=1)
    eff = (2.0 * inter + smooth) / (jnp.sum(xf, axis=1) + jnp.sum(tf, axis=1) + smooth)
    return jnp.sum(eff) / N


if __name__ == "__main__":
    key = jax.random.PRNGKey(0)
    k1, k2, k3, k4, k5, k6 = jax.random.split(key, 6)

    # (1) Small 3-D volume: f32 probabilities vs f32 binary mask (S % 128 == 0,
    #     zero-copy path, no masking needed).
    x1 = jax.nn.sigmoid(jax.random.normal(k1, (2, 16, 16, 16), dtype=jnp.float32))
    t1 = (jax.random.uniform(k2, (2, 16, 16, 16)) > 0.5).astype(jnp.float32)
    d1 = jax.block_until_ready(binary_dice(x1, t1))
    r1 = jax.block_until_ready(_reference_dice(x1, t1))
    assert jnp.allclose(d1, r1, atol=1e-5, rtol=1e-5), (d1, r1)

    # (2) Ragged flattened size + native bf16 input (mixed dtypes on the wire,
    #     exercises the minimal-pad fallback and the in-kernel upcast).
    x2 = jax.nn.sigmoid(jax.random.normal(k3, (2, 10, 9, 7))).astype(jnp.bfloat16)
    t2 = (jax.random.uniform(k4, (2, 10, 9, 7)) > 0.5).astype(jnp.float32)
    d2 = jax.block_until_ready(binary_dice(x2, t2))
    r2 = jax.block_until_ready(_reference_dice(x2, t2))
    assert jnp.allclose(d2, r2, atol=1e-4, rtol=1e-4), (d2, r2)

    # (3) Batch of one: exercises the P=2 megacore split, the partial final
    #     tile mask and the clamped redundant tile (n_blocks odd).
    x3 = jax.nn.sigmoid(jax.random.normal(k5, (1, 72, 128), dtype=jnp.float32))
    t3 = (jax.random.uniform(k6, (1, 72, 128)) > 0.5).astype(jnp.float32)
    d3 = jax.block_until_ready(binary_dice(x3, t3))
    r3 = jax.block_until_ready(_reference_dice(x3, t3))
    assert jnp.allclose(d3, r3, atol=1e-5, rtol=1e-5), (d3, r3)

    print("KERNEL_OK")
</pallas_src>

<mosaic_0001>
module attributes {stable_mosaic.version = 11 : i64} {
  func.func @_dice_stats_kernel(%arg0: i32, %arg1: i32, %arg2: i32, %arg3: memref<1x32x128xf32, #tpu.memory_space<vmem>>, %arg4: memref<1x32x128xf32, #tpu.memory_space<vmem>>, %arg5: memref<1x1x3x32x128xf32, #tpu.memory_space<vmem>>) attributes {dimension_semantics = [#tpu.dimension_semantics<parallel>, #tpu.dimension_semantics<parallel>, #tpu.dimension_semantics<arbitrary>], iteration_bounds = array<i64: 2, 1, 1>, scalar_prefetch = 0 : i64, scratch_operands = 0 : i64, tpu.core_type = #tpu.core_type<tc>, window_params = [{transform_indices = @transform_0, window_bounds = array<i64: 1, 32, 128>}, {transform_indices = @transform_1, window_bounds = array<i64: 1, 32, 128>}, {transform_indices = @transform_2, window_bounds = array<i64: 1, 1, 3, 32, 128>}]} {
    %c0_i32 = arith.constant 0 : i32
    %0 = arith.cmpi eq, %arg2, %c0_i32 : i32
    %1 = arith.extui %0 : i1 to i32
    %c0_i32_0 = arith.constant 0 : i32
    %2 = arith.cmpi ne, %1, %c0_i32_0 : i32
    scf.if %2 {
      %cst_38 = arith.constant 0.000000e+00 : f32
      %46 = vector.broadcast %cst_38 : f32 to vector<1x1x3x32x128xf32>
      %c0_39 = arith.constant 0 : index
      %c0_40 = arith.constant 0 : index
      %c0_41 = arith.constant 0 : index
      %c0_42 = arith.constant 0 : index
      %c0_43 = arith.constant 0 : index
      %47 = vector.load %arg5[%c0_39, %c0_40, %c0_41, %c0_42, %c0_43] : memref<1x1x3x32x128xf32, #tpu.memory_space<vmem>>, vector<1x1x3x32x128xf32>
      tpu.vector_store %arg5[%c0_39, %c0_40, %c0_41, %c0_42, %c0_43], %46 {strides = array<i32>} : memref<1x1x3x32x128xf32, #tpu.memory_space<vmem>>, vector<1x1x3x32x128xf32>,
    } else {
    }
    %c1_i32 = arith.constant 1 : i32
    %3 = arith.muli %arg1, %c1_i32 : i32
    %4 = arith.addi %3, %arg2 : i32
    %c32_i32 = arith.constant 32 : i32
    %5 = arith.muli %4, %c32_i32 : i32
    %c32_i32_1 = arith.constant 32 : i32
    %6 = arith.subi %c32_i32_1, %5 : i32
    %7 = tpu.iota {dimensions = array<i32: 0>} : vector<32x128xi32>
    %cst = arith.constant 0.000000e+00 : f32
    %8 = vector.broadcast %cst : f32 to vector<32x128xf32>
    %c0_i32_2 = arith.constant 0 : i32
    %c32_i32_3 = arith.constant 32 : i32
    %9 = arith.muli %c0_i32_2, %c32_i32_3 : i32
    %10 = tpu.assume_multiple %9, 32 : i32
    %11 = arith.subi %6, %10 : i32
    %12 = vector.broadcast %11 : i32 to vector<32x128xi32>
    %13 = arith.cmpi slt, %7, %12 : vector<32x128xi32>
    %c0 = arith.constant 0 : index
    %14 = arith.index_cast %10 : i32 to index
    %c0_4 = arith.constant 0 : index
    %15 = vector.load %arg3[%c0, %14, %c0_4] : memref<1x32x128xf32, #tpu.memory_space<vmem>>, vector<1x32x128xf32>
    %16 = vector.shape_cast %15 : vector<1x32x128xf32> to vector<32x128xf32>
    %c0_5 = arith.constant 0 : index
    %17 = arith.index_cast %10 : i32 to index
    %c0_6 = arith.constant 0 : index
    %18 = vector.load %arg4[%c0_5, %17, %c0_6] : memref<1x32x128xf32, #tpu.memory_space<vmem>>, vector<1x32x128xf32>
    %19 = vector.shape_cast %18 : vector<1x32x128xf32> to vector<32x128xf32>
    %cst_7 = arith.constant 0.000000e+00 : f32
    %20 = vector.broadcast %cst_7 : f32 to vector<32x128xf32>
    %21 = arith.select %13, %16, %20 : vector<32x128xi1>, vector<32x128xf32>
    %cst_8 = arith.constant 0.000000e+00 : f32
    %22 = vector.broadcast %cst_8 : f32 to vector<32x128xf32>
    %23 = arith.select %13, %19, %22 : vector<32x128xi1>, vector<32x128xf32>
    %24 = arith.mulf %21, %23 : vector<32x128xf32>
    %25 = arith.addf %8, %24 : vector<32x128xf32>
    %26 = arith.addf %8, %21 : vector<32x128xf32>
    %27 = arith.addf %8, %23 : vector<32x128xf32>
    %c1_i32_9 = arith.constant 1 : i32
    %c0_10 = arith.constant 0 : index
    %c0_11 = arith.constant 0 : index
    %c0_12 = arith.constant 0 : index
    %c0_13 = arith.constant 0 : index
    %c0_14 = arith.constant 0 : index
    %28 = vector.load %arg5[%c0_10, %c0_11, %c0_12, %c0_13, %c0_14] : memref<1x1x3x32x128xf32, #tpu.memory_space<vmem>>, vector<1x1x1x32x128xf32>
    %29 = vector.shape_cast %28 : vector<1x1x1x32x128xf32> to vector<32x128xf32>
    %30 = arith.addf %29, %25 : vector<32x128xf32>
    %c0_15 = arith.constant 0 : index
    %c0_16 = arith.constant 0 : index
    %c0_17 = arith.constant 0 : index
    %c0_18 = arith.constant 0 : index
    %c0_19 = arith.constant 0 : index
    %31 = vector.load %arg5[%c0_15, %c0_16, %c0_17, %c0_18, %c0_19] : memref<1x1x3x32x128xf32, #tpu.memory_space<vmem>>, vector<1x1x1x32x128xf32>
    %32 = vector.shape_cast %31 : vector<1x1x1x32x128xf32> to vector<32x128xf32>
    %33 = vector.shape_cast %30 : vector<32x128xf32> to vector<1x1x1x32x128xf32>
    tpu.vector_store %arg5[%c0_15, %c0_16, %c0_17, %c0_18, %c0_19], %33 {strides = array<i32>} : memref<1x1x3x32x128xf32, #tpu.memory_space<vmem>>, vector<1x1x1x32x128xf32>,
    %c0_20 = arith.constant 0 : index
    %c0_21 = arith.constant 0 : index
    %c1 = arith.constant 1 : index
    %c0_22 = arith.constant 0 : index
    %c0_23 = arith.constant 0 : index
    %34 = vector.load %arg5[%c0_20, %c0_21, %c1, %c0_22, %c0_23] : memref<1x1x3x32x128xf32, #tpu.memory_space<vmem>>, vector<1x1x1x32x128xf32>
    %35 = vector.shape_cast %34 : vector<1x1x1x32x128xf32> to vector<32x128xf32>
    %36 = arith.addf %35, %26 : vector<32x128xf32>
    %c0_24 = arith.constant 0 : index
    %c0_25 = arith.constant 0 : index
    %c1_26 = arith.constant 1 : index
    %c0_27 = arith.constant 0 : index
    %c0_28 = arith.constant 0 : index
    %37 = vector.load %arg5[%c0_24, %c0_25, %c1_26, %c0_27, %c0_28] : memref<1x1x3x32x128xf32, #tpu.memory_space<vmem>>, vector<1x1x1x32x128xf32>
    %38 = vector.shape_cast %37 : vector<1x1x1x32x128xf32> to vector<32x128xf32>
    %39 = vector.shape_cast %36 : vector<32x128xf32> to vector<1x1x1x32x128xf32>
    tpu.vector_store %arg5[%c0_24, %c0_25, %c1_26, %c0_27, %c0_28], %39 {strides = array<i32>} : memref<1x1x3x32x128xf32, #tpu.memory_space<vmem>>, vector<1x1x1x32x128xf32>,
    %c0_29 = arith.constant 0 : index
    %c0_30 = arith.constant 0 : index
    %c2 = arith.constant 2 : index
    %c0_31 = arith.constant 0 : index
    %c0_32 = arith.constant 0 : index
    %40 = vector.load %arg5[%c0_29, %c0_30, %c2, %c0_31, %c0_32] : memref<1x1x3x32x128xf32, #tpu.memory_space<vmem>>, vector<1x1x1x32x128xf32>
    %41 = vector.shape_cast %40 : vector<1x1x1x32x128xf32> to vector<32x128xf32>
    %42 = arith.addf %41, %27 : vector<32x128xf32>
    %c0_33 = arith.constant 0 : index
    %c0_34 = arith.constant 0 : index
    %c2_35 = arith.constant 2 : index
    %c0_36 = arith.constant 0 : index
    %c0_37 = arith.constant 0 : index
    %43 = vector.load %arg5[%c0_33, %c0_34, %c2_35, %c0_36, %c0_37] : memref<1x1x3x32x128xf32, #tpu.memory_space<vmem>>, vector<1x1x1x32x128xf32>
    %44 = vector.shape_cast %43 : vector<1x1x1x32x128xf32> to vector<32x128xf32>
    %45 = vector.shape_cast %42 : vector<32x128xf32> to vector<1x1x1x32x128xf32>
    tpu.vector_store %arg5[%c0_33, %c0_34, %c2_35, %c0_36, %c0_37], %45 {strides = array<i32>} : memref<1x1x3x32x128xf32, #tpu.memory_space<vmem>>, vector<1x1x1x32x128xf32>,
    return
  }
  func.func @transform_0(%arg0: i32, %arg1: i32, %arg2: i32) -> (i32, i32, i32) {
    %c1_i32 = arith.constant 1 : i32
    %0 = arith.muli %arg1, %c1_i32 : i32
    %1 = arith.addi %0, %arg2 : i32
    %c0_i32 = arith.constant 0 : i32
    %2 = arith.minsi %1, %c0_i32 : i32
    %c0_i32_0 = arith.constant 0 : i32
    %c0_i32_1 = arith.constant 0 : i32
    return %arg0, %2, %c0_i32_0 : i32, i32, i32
  }
  func.func @transform_1(%arg0: i32, %arg1: i32, %arg2: i32) -> (i32, i32, i32) {
    %c1_i32 = arith.constant 1 : i32
    %0 = arith.muli %arg1, %c1_i32 : i32
    %1 = arith.addi %0, %arg2 : i32
    %c0_i32 = arith.constant 0 : i32
    %2 = arith.minsi %1, %c0_i32 : i32
    %c0_i32_0 = arith.constant 0 : i32
    %c0_i32_1 = arith.constant 0 : i32
    return %arg0, %2, %c0_i32_0 : i32, i32, i32
  }
  func.func @transform_2(%arg0: i32, %arg1: i32, %arg2: i32) -> (i32, i32, i32, i32, i32) {
    %c0_i32 = arith.constant 0 : i32
    %c0_i32_0 = arith.constant 0 : i32
    %c0_i32_1 = arith.constant 0 : i32
    %c0_i32_2 = arith.constant 0 : i32
    return %arg0, %arg1, %c0_i32, %c0_i32_0, %c0_i32_1 : i32, i32, i32, i32, i32
  }
}

</mosaic_0001>

<llo_original>
// kernel: binary_dice.1
$region0: #{binary_dice.1}
  #allocation0 [shape = 'u32[]', space=smem, size = 0x4, offset = 0x4, fixed_abs, tag = 'smem constant byte address 0x4 - core index']
  #allocation1 [shape = 'u32[144,128]{1,0:T(1,128)}', space=vmem, size = 0x12000, scoped, tag = 'internal scratch']
  %s0 = inlined_call_operand.vmem [shape: f32[2,32,128], index: 0, kind: input, shape index: {}]
  %s1 = inlined_call_operand.vmem [shape: f32[2,32,128], index: 1, kind: input, shape index: {}]
  %s2 = inlined_call_operand.vmem [shape: f32[2,1,3,32,128], index: 2, kind: output, shape index: {}]
  %s3 = sld [smem:[#allocation0]]
  $region45: #{binary_dice.1} parent=0
    _
  %s5 = ssub.s32 1, %s3
  %s6 = scalar_select 0, %s5, %s3
  loop: start=0, step=1, limit=4
  $region2: #{binary_dice.1} parent=0 // loop_pre_header
    _
  $region3: #{binary_dice.1} parent=0 // loop_header
    %s8 = sphi 0, %s12
    %p9 = scmp.ge.s32.totalorder %s8, 4
    %s15 = sphi 0, %s34
    %s16 = sphi 0, %s30
    %s17 = sphi 0, %s26
    %s18 = sphi 0, %s15
    %s19 = sphi 0, %s16
    %s20 = sphi 0, %s17
    %s21 = sphi 0, %s18
    %s22 = sphi 0, %s19
    %s23 = sphi 0, %s20
    %s45 = sphi 0, %s47
    %s48 = sphi 0, %s45
    %s49 = sphi 0, %s48
    %s65 = sphi 0, %s49
    %s79 = sphi 0, %s81
    %s82 = sphi 0, %s79
    %s83 = sphi 0, %s82
    %s99 = sphi 0, %s83
    %s107 = sphi 0, %s109
    %s110 = sphi 0, %s107
    %s111 = sphi 0, %s110
    %s127 = sphi 0, %s111
  $region4: #{binary_dice.1} parent=0 // loop_header_branch
    %11 = sbr.rel (%p9) target = $region8
  $region5: #{binary_dice.1} parent=0 // loop_body
    %s13 = ssub.s32 %s8, 1
    %s14 = ssub.s32 %s8, 2
    %s24 = sadd.s32 1, %s17
    %p25 = scmp.ge.s32.totalorder %s24, 1
    %s26 = scalar_select %p25, 0, %s24
    %s27 = sadd.s32 1, %s16
    %s28 = scalar_select %p25, %s27, %s16
    %p29 = scmp.ge.s32.totalorder %s28, 1
    %s30 = scalar_select %p29, 0, %s28
    %s31 = sadd.s32 1, %s15
    %s32 = scalar_select %p29, %s31, %s15
    %p33 = scmp.ge.s32.totalorder %s32, 2
    %s34 = scalar_select %p33, 0, %s32
    %s35 = sadd.s32 %s16, %s17
    %p36 = scmp.lt.s32.totalorder %s35, 0
    %s37 = scalar_select %p36, %s35, 0
    %s38 = sadd.s32 %s30, %s26
    %p39 = scmp.lt.s32.totalorder %s38, 0
    %s40 = scalar_select %p39, %s38, 0
    %s41 = ssub.s32 %s15, %s34
    %s42 = ssub.s32 %s37, %s40
    %s43 = sor.u32 %s41, %s42
    %p44 = scmp.eq.s32.totalorder %s43, 0
    %s46 = sadd.s32 %s45, 1
    %s47 = scalar_select %p44, %s45, %s46
    %p50 = pneg %p44
    %p51 = scmp.eq.s32.totalorder %s8, 1
    %p52 = por %p50, %p51
    %p53 = scmp.ne.s32.totalorder %s45, %s48
    %p54 = scmp.eq.s32.totalorder %s8, 0
    %p55 = por %p53, %p54
    %p56 = scmp.ne.s32.totalorder %s45, %s48
    %p57 = scmp.eq.s32.totalorder %s13, 1
    %p58 = por %p56, %p57
    %p59 = scmp.ne.s32.totalorder %s48, %s49
    %p60 = scmp.eq.s32.totalorder %s13, 0
    %p61 = por %p59, %p60
    %p62 = scmp.ne.s32.totalorder %s48, %s49
    %p63 = scmp.eq.s32.totalorder %s14, 1
    %p64 = por %p62, %p63
    %p66 = scmp.ne.s32.totalorder %s49, %s65
    %p67 = scmp.eq.s32.totalorder %s14, 0
    %p68 = por %p66, %p67
    %s69 = sadd.s32 %s16, %s17
    %p70 = scmp.lt.s32.totalorder %s69, 0
    %s71 = scalar_select %p70, %s69, 0
    %s72 = sadd.s32 %s30, %s26
    %p73 = scmp.lt.s32.totalorder %s72, 0
    %s74 = scalar_select %p73, %s72, 0
    %s75 = ssub.s32 %s15, %s34
    %s76 = ssub.s32 %s71, %s74
    %s77 = sor.u32 %s75, %s76
    %p78 = scmp.eq.s32.totalorder %s77, 0
    %s80 = sadd.s32 %s79, 1
    %s81 = scalar_select %p78, %s79, %s80
    %p84 = pneg %p78
    %p85 = scmp.eq.s32.totalorder %s8, 1
    %p86 = por %p84, %p85
    %p87 = scmp.ne.s32.totalorder %s79, %s82
    %p88 = scmp.eq.s32.totalorder %s8, 0
    %p89 = por %p87, %p88
    %p90 = scmp.ne.s32.totalorder %s79, %s82
    %p91 = scmp.eq.s32.totalorder %s13, 1
    %p92 = por %p90, %p91
    %p93 = scmp.ne.s32.totalorder %s82, %s83
    %p94 = scmp.eq.s32.totalorder %s13, 0
    %p95 = por %p93, %p94
    %p96 = scmp.ne.s32.totalorder %s82, %s83
    %p97 = scmp.eq.s32.totalorder %s14, 1
    %p98 = por %p96, %p97
    %p100 = scmp.ne.s32.totalorder %s83, %s99
    %p101 = scmp.eq.s32.totalorder %s14, 0
    %p102 = por %p100, %p101
    %s103 = ssub.s32 %s15, %s34
    %s104 = ssub.s32 %s16, %s30
    %s105 = sor.u32 %s103, %s104
    %p106 = scmp.eq.s32.totalorder %s105, 0
    %s108 = sadd.s32 %s107, 1
    %s109 = scalar_select %p106, %s107, %s108
    %p112 = pneg %p106
    %p113 = scmp.eq.s32.totalorder %s8, 1
    %p114 = por %p112, %p113
    %p115 = scmp.ne.s32.totalorder %s107, %s110
    %p116 = scmp.eq.s32.totalorder %s8, 0
    %p117 = por %p115, %p116
    %p118 = scmp.ne.s32.totalorder %s107, %s110
    %p119 = scmp.eq.s32.totalorder %s13, 1
    %p120 = por %p118, %p119
    %p121 = scmp.ne.s32.totalorder %s110, %s111
    %p122 = scmp.eq.s32.totalorder %s13, 0
    %p123 = por %p121, %p122
    %p124 = scmp.ne.s32.totalorder %s110, %s111
    %p125 = scmp.eq.s32.totalorder %s14, 1
    %p126 = por %p124, %p125
    %p128 = scmp.ne.s32.totalorder %s111, %s127
    %p129 = scmp.eq.s32.totalorder %s14, 0
    %p130 = por %p128, %p129
    %p131 = scmp.le.s32.totalorder 1, %s8
    %p132 = scmp.lt.s32.totalorder %s8, 3
    %p133 = pnand %p131, %p132
    %p134 = pneg %p133
    // Predicated region
    $region9: #{binary_dice.1} parent=5 // pred_check
      _
    $region10: #{binary_dice.1} parent=5 // pred_check_branch
      %136 = sbr.rel (%p133) target = $region12
    $region11: #{binary_dice.1} parent=5 // pred_region
      %s137 = ssub.s32 %s8, 1
    $region12: #{binary_dice.1} parent=5 // pred_fallthru
      _
    %p138 = scmp.lt.s32.totalorder %s8, 2
    // Predicated region
    $region13: #{binary_dice.1} parent=5 // pred_check
      %p139 = pneg %p138
    $region14: #{binary_dice.1} parent=5 // pred_check_branch
      %141 = sbr.rel (%p139) target = $region16
    $region15: #{binary_dice.1} parent=5 // pred_region
      // Predicated region
      $region17: #{binary_dice.1} parent=15 // pred_check
        %p142 = pneg %p55
      $region18: #{binary_dice.1} parent=15 // pred_check_branch
        %144 = sbr.rel (%p142) target = $region20
      $region19: #{binary_dice.1} parent=15 // pred_region
        %s145 = sadd.s32 %s16, %s17
        %p146 = scmp.lt.s32.totalorder %s145, 0
        %s147 = scalar_select %p146, %s145, 0
        %s148 = smul.u32 4, %s147
        %p149 = scmp.lt.s32.totalorder %s15, 1
        %s150 = scalar_select %p149, %s15, 1
        %p151 = scmp.lt.s32.totalorder %s148, 3
        %s152 = scalar_select %p151, %s148, 3
        %s153 = smul.addr %s150, 4
        %s154 = sadd.s32 %s152, %s153
        %s155 = smul.addr %s154, 8
        %s156 = scalar_lea.vmem %s0, %s155
        %s157 = sadd.s32 %s16, %s17
        %p158 = scmp.lt.s32.totalorder %s157, 0
        %s159 = scalar_select %p158, %s157, 0
        %s160 = smul.u32 4, %s159
      $region20: #{binary_dice.1} parent=15 // pred_fallthru
        _
      // Predicated region
      $region21: #{binary_dice.1} parent=15 // pred_check
        %p161 = pneg %p89
      $region22: #{binary_dice.1} parent=15 // pred_check_branch
        %163 = sbr.rel (%p161) target = $region24
      $region23: #{binary_dice.1} parent=15 // pred_region
        %s164 = sadd.s32 %s16, %s17
        %p165 = scmp.lt.s32.totalorder %s164, 0
        %s166 = scalar_select %p165, %s164, 0
        %s167 = smul.u32 4, %s166
        %p168 = scmp.lt.s32.totalorder %s15, 1
        %s169 = scalar_select %p168, %s15, 1
        %p170 = scmp.lt.s32.totalorder %s167, 3
        %s171 = scalar_select %p170, %s167, 3
        %s172 = smul.addr %s169, 4
        %s173 = sadd.s32 %s171, %s172
        %s174 = smul.addr %s173, 8
        %s175 = scalar_lea.vmem %s1, %s174
        %s176 = sadd.s32 %s16, %s17
        %p177 = scmp.lt.s32.totalorder %s176, 0
        %s178 = scalar_select %p177, %s176, 0
        %s179 = smul.u32 4, %s178
      $region24: #{binary_dice.1} parent=15 // pred_fallthru
        _
    $region16: #{binary_dice.1} parent=5 // pred_fallthru
      _
    %p180 = scmp.le.s32.totalorder 1, %s8
    %p181 = scmp.lt.s32.totalorder %s8, 3
    %p182 = pnand %p180, %p181
    %p183 = pneg %p182
    // Predicated region
    $region25: #{binary_dice.1} parent=5 // pred_check
      _
    $region26: #{binary_dice.1} parent=5 // pred_check_branch
      %185 = sbr.rel (%p182) target = $region28
    $region27: #{binary_dice.1} parent=5 // pred_region
      %s186 = ssub.s32 %s8, 1
      %s187 = sadd.s32 %s19, %s20
      %p188 = scmp.lt.s32.totalorder %s187, 0
      %s189 = scalar_select %p188, %s187, 0
      %s190 = smul.u32 4, %s189
      %p191 = scmp.lt.s32.totalorder %s18, 1
      %s192 = scalar_select %p191, %s18, 1
      %p193 = scmp.lt.s32.totalorder %s190, 3
      %s194 = scalar_select %p193, %s190, 3
      %s195 = smul.addr %s192, 4
      %s196 = sadd.s32 %s194, %s195
      %s197 = smul.addr %s196, 8
      %s198 = scalar_lea.vmem %s0, %s197
      %p199 = pneg %p61
      %p200 = pneg %p58
      %s201 = sadd.s32 %s19, %s20
      %p202 = scmp.lt.s32.totalorder %s201, 0
      %s203 = scalar_select %p202, %s201, 0
      %s204 = smul.u32 4, %s203
      %p205 = scmp.lt.s32.totalorder %s18, 1
      %s206 = scalar_select %p205, %s18, 1
      %p207 = scmp.lt.s32.totalorder %s204, 3
      %s208 = scalar_select %p207, %s204, 3
      %s209 = smul.addr %s206, 4
      %s210 = sadd.s32 %s208, %s209
      %s211 = smul.addr %s210, 8
      %s212 = scalar_lea.vmem %s1, %s211
      %p213 = pneg %p95
      %p214 = pneg %p92
      %p215 = pneg %p123
      %p216 = pneg %p120
      %p217 = scmp.lt.s32.totalorder %s18, 1
      %s218 = scalar_select %p217, %s18, 1
      %p219 = scmp.lt.s32.totalorder %s19, 0
      %s220 = scalar_select %p219, %s19, 0
      %s221 = smul.addr %s220, 12
      %s222 = smul.addr %s218, 12
      %s223 = sadd.s32 %s221, %s222
      %s224 = smul.addr %s223, 8
      %s225 = scalar_lea.vmem %s2, %s224
      %s226 = sadd.s32 %s19, %s20
      %p227 = scmp.lt.s32.totalorder %s226, 0
      %s228 = scalar_select %p227, %s226, 0
      %s229 = smul.u32 4, %s228
      %p230 = scmp.lt.s32.totalorder %s18, 1
      %s231 = scalar_select %p230, %s18, 1
      %p232 = scmp.lt.s32.totalorder %s229, 3
      %s233 = scalar_select %p232, %s229, 3
      %s234 = smul.addr %s231, 4
      %s235 = sadd.s32 %s233, %s234
      %s236 = smul.addr %s235, 8
      %s237 = scalar_lea.vmem %s0, %s236
      %s238 = sadd.s32 %s19, %s20
      %p239 = scmp.lt.s32.totalorder %s238, 0
      %s240 = scalar_select %p239, %s238, 0
      %s241 = smul.u32 4, %s240
      %s242 = sadd.s32 %s19, %s20
      %p243 = scmp.lt.s32.totalorder %s242, 0
      %s244 = scalar_select %p243, %s242, 0
      %s245 = smul.u32 4, %s244
      %p246 = scmp.lt.s32.totalorder %s18, 1
      %s247 = scalar_select %p246, %s18, 1
      %p248 = scmp.lt.s32.totalorder %s245, 3
      %s249 = scalar_select %p248, %s245, 3
      %s250 = smul.addr %s247, 4
      %s251 = sadd.s32 %s249, %s250
      %s252 = smul.addr %s251, 8
      %s253 = scalar_lea.vmem %s1, %s252
      %s254 = sadd.s32 %s19, %s20
      %p255 = scmp.lt.s32.totalorder %s254, 0
      %s256 = scalar_select %p255, %s254, 0
      %s257 = smul.u32 4, %s256
      %p258 = scmp.lt.s32.totalorder %s18, 1
      %s259 = scalar_select %p258, %s18, 1
      %p260 = scmp.lt.s32.totalorder %s19, 0
      %s261 = scalar_select %p260, %s19, 0
      %s262 = smul.addr %s261, 12
      %s263 = smul.addr %s259, 12
      %s264 = sadd.s32 %s262, %s263
      %s265 = smul.addr %s264, 8
      %s266 = scalar_lea.vmem %s2, %s265
      %p267 = scmp.eq.s32.totalorder %s20, 0
      // Predicated region
      $region29: #{binary_dice.1} parent=27 // pred_check
        %p268 = pneg %p267
      $region30: #{binary_dice.1} parent=27 // pred_check_branch
        %270 = sbr.rel (%p268) target = $region32
      $region31: #{binary_dice.1} parent=27 // pred_region
        %271 = vst [vmem:[%s266] sm:$0xff] 0.0
        %272 = vst [vmem:[%s266 + $0x8] sm:$0xff] 0.0
        %273 = vst [vmem:[%s266 + $0x10] sm:$0xff] 0.0
        %274 = vst [vmem:[%s266 + $0x18] sm:$0xff] 0.0
        %275 = vst [vmem:[%s266 + $0x20] sm:$0xff] 0.0
        %276 = vst [vmem:[%s266 + $0x28] sm:$0xff] 0.0
        %277 = vst [vmem:[%s266 + $0x30] sm:$0xff] 0.0
        %278 = vst [vmem:[%s266 + $0x38] sm:$0xff] 0.0
        %279 = vst [vmem:[%s266 + $0x40] sm:$0xff] 0.0
        %280 = vst [vmem:[%s266 + $0x48] sm:$0xff] 0.0
        %281 = vst [vmem:[%s266 + $0x50] sm:$0xff] 0.0
        %282 = vst [vmem:[%s266 + $0x58] sm:$0xff] 0.0
      $region32: #{binary_dice.1} parent=27 // pred_fallthru
        _
      %s283 = sadd.s32 %s19, %s20
      %s284 = smul.u32 %s283, 32
      %s285 = ssub.s32 32, %s284
      %v286 = vlaneseq
      %v287 = vshrl.u32 %v286, 7
      %v288 = vadd.s32 %v287, 8
      %v289 = vadd.s32 %v287, 16
      %v290 = vadd.s32 %v287, 24
      %s291 = ssub.s32 %s285, 0
      %v292 = vstv %s291
      %vm293 = vcmp.lt.s32.totalorder %v287, %v292
      %vm294 = vcmp.lt.s32.totalorder %v288, %v292
      %vm295 = vcmp.lt.s32.totalorder %v289, %v292
      %vm296 = vcmp.lt.s32.totalorder %v290, %v292
      %v297 = vld [vmem:[%s237] sm:$0xff]
      %v298 = vld [vmem:[%s237 + $0x8] sm:$0xff]
      %v299 = vld [vmem:[%s237 + $0x10] sm:$0xff]
      %v300 = vld [vmem:[%s237 + $0x18] sm:$0xff]
      %v301 = vld [vmem:[%s253] sm:$0xff]
      %v302 = vld [vmem:[%s253 + $0x8] sm:$0xff]
      %v303 = vld [vmem:[%s253 + $0x10] sm:$0xff]
      %v304 = vld [vmem:[%s253 + $0x18] sm:$0xff]
      %v305 = vsel %vm293, %v297, 0.0
      %v306 = vsel %vm294, %v298, 0.0
      %v307 = vsel %vm295, %v299, 0.0
      %v308 = vsel %vm296, %v300, 0.0
      %v309 = vsel %vm293, %v301, 0.0
      %v310 = vsel %vm294, %v302, 0.0
      %v311 = vsel %vm295, %v303, 0.0
      %v312 = vsel %vm296, %v304, 0.0
      %v313 = vmul.f32 %v305, %v309
      %v314 = vmul.f32 %v306, %v310
      %v315 = vmul.f32 %v307, %v311
      %v316 = vmul.f32 %v308, %v312
      %v317 = vadd.f32 %v313, 0.0
      %v318 = vadd.f32 %v314, 0.0
      %v319 = vadd.f32 %v315, 0.0
      %v320 = vadd.f32 %v316, 0.0
      %v321 = vadd.f32 %v305, 0.0
      %v322 = vadd.f32 %v306, 0.0
      %v323 = vadd.f32 %v307, 0.0
      %v324 = vadd.f32 %v308, 0.0
      %v325 = vadd.f32 %v309, 0.0
      %v326 = vadd.f32 %v310, 0.0
      %v327 = vadd.f32 %v311, 0.0
      %v328 = vadd.f32 %v312, 0.0
      %v329 = vld [vmem:[%s266] sm:$0xff]
      %v330 = vld [vmem:[%s266 + $0x8] sm:$0xff]
      %v331 = vld [vmem:[%s266 + $0x10] sm:$0xff]
      %v332 = vld [vmem:[%s266 + $0x18] sm:$0xff]
      %v333 = vadd.f32 %v329, %v317
      %v334 = vadd.f32 %v330, %v318
      %v335 = vadd.f32 %v331, %v319
      %v336 = vadd.f32 %v332, %v320
      %337 = vst [vmem:[%s266] sm:$0xff] %v333
      %338 = vst [vmem:[%s266 + $0x8] sm:$0xff] %v334
      %339 = vst [vmem:[%s266 + $0x10] sm:$0xff] %v335
      %340 = vst [vmem:[%s266 + $0x18] sm:$0xff] %v336
      %s341 = scalar_lea.vmem %s266, 32
      %v342 = vld [vmem:[%s341] sm:$0xff]
      %v343 = vld [vmem:[%s341 + $0x8] sm:$0xff]
      %v344 = vld [vmem:[%s341 + $0x10] sm:$0xff]
      %v345 = vld [vmem:[%s341 + $0x18] sm:$0xff]
      %v346 = vadd.f32 %v342, %v321
      %v347 = vadd.f32 %v343, %v322
      %v348 = vadd.f32 %v344, %v323
      %v349 = vadd.f32 %v345, %v324
      %350 = vst [vmem:[%s341] sm:$0xff] %v346
      %351 = vst [vmem:[%s341 + $0x8] sm:$0xff] %v347
      %352 = vst [vmem:[%s341 + $0x10] sm:$0xff] %v348
      %353 = vst [vmem:[%s341 + $0x18] sm:$0xff] %v349
      %s354 = scalar_lea.vmem %s266, 64
      %v355 = vld [vmem:[%s354] sm:$0xff]
      %v356 = vld [vmem:[%s354 + $0x8] sm:$0xff]
      %v357 = vld [vmem:[%s354 + $0x10] sm:$0xff]
      %v358 = vld [vmem:[%s354 + $0x18] sm:$0xff]
      %v359 = vadd.f32 %v355, %v325
      %v360 = vadd.f32 %v356, %v326
      %v361 = vadd.f32 %v357, %v327
      %v362 = vadd.f32 %v358, %v328
      %363 = vst [vmem:[%s354] sm:$0xff] %v359
      %364 = vst [vmem:[%s354 + $0x8] sm:$0xff] %v360
      %365 = vst [vmem:[%s354 + $0x10] sm:$0xff] %v361
      %366 = vst [vmem:[%s354 + $0x18] sm:$0xff] %v362
      %p367 = scmp.lt.s32.totalorder %s18, 1
      %s368 = scalar_select %p367, %s18, 1
      %p369 = scmp.lt.s32.totalorder %s19, 0
      %s370 = scalar_select %p369, %s19, 0
      %s371 = smul.addr %s370, 12
      %s372 = smul.addr %s368, 12
      %s373 = sadd.s32 %s371, %s372
      %s374 = smul.addr %s373, 8
      %s375 = scalar_lea.vmem %s2, %s374
      // Predicated region
      $region33: #{binary_dice.1} parent=27 // pred_check
        %p376 = pneg %p120
      $region34: #{binary_dice.1} parent=27 // pred_check_branch
        %378 = sbr.rel (%p376) target = $region36
      $region35: #{binary_dice.1} parent=27 // pred_region
        _
      $region36: #{binary_dice.1} parent=27 // pred_fallthru
        _
    $region28: #{binary_dice.1} parent=5 // pred_fallthru
      _
    %p379 = scmp.le.s32.totalorder 2, %s8
    // Predicated region
    $region37: #{binary_dice.1} parent=5 // pred_check
      %p380 = pneg %p379
    $region38: #{binary_dice.1} parent=5 // pred_check_branch
      %382 = sbr.rel (%p380) target = $region40
    $region39: #{binary_dice.1} parent=5 // pred_region
      %s383 = ssub.s32 %s8, 2
      // Predicated region
      $region41: #{binary_dice.1} parent=39 // pred_check
        %p384 = pneg %p126
      $region42: #{binary_dice.1} parent=39 // pred_check_branch
        %386 = sbr.rel (%p384) target = $region44
      $region43: #{binary_dice.1} parent=39 // pred_region
        %p387 = scmp.lt.s32.totalorder %s21, 1
        %s388 = scalar_select %p387, %s21, 1
        %p389 = scmp.lt.s32.totalorder %s22, 0
        %s390 = scalar_select %p389, %s22, 0
        %s391 = smul.addr %s390, 12
        %s392 = smul.addr %s388, 12
        %s393 = sadd.s32 %s391, %s392
        %s394 = smul.addr %s393, 8
        %s395 = scalar_lea.vmem %s2, %s394
      $region44: #{binary_dice.1} parent=39 // pred_fallthru
        _
    $region40: #{binary_dice.1} parent=5 // pred_fallthru
      _
  $region6: #{binary_dice.1} parent=0 // loop_footer
    %s12 = sadd.s32 1, %s8
  $region7: #{binary_dice.1} parent=0 // loop_footer_branch
    %7 = sbr.rel target = $region3
  $region8: #{binary_dice.1} parent=0 // loop_exit
    _

</llo_original>
